<compile_context>
chip_gen: v5e
topology: v5e:2x2
jax: 0.10.0
libtpu: 0.0.40
codegen_flags: <defaults>
</compile_context>

<pallas_src>
import jax
import jax.numpy as jnp
from jax.experimental import pallas as pl
from jax.experimental.pallas import tpu as pltpu

_TARGET_BLOCK_BYTES = 3 << 20      # ~3 MiB feature block per grid step (tiled path)
_FUSED_F32_PER_BATCH = 2 << 20     # fused path if per-batch f32 working set fits this
_VMEM_LIMIT_CAP = 48 << 20         # leave headroom vs v7x's 64 MiB per-core VMEM
_VMEM_LIMIT_FLOOR = 24 << 20


def _round_up(x, m):
    return (x + m - 1) // m * m


def _largest_divisor_leq(n, k):
    k = max(1, min(n, int(k)))
    for d in range(k, 0, -1):
        if n % d == 0:
            return d
    return 1


def _vmem_limit(bt, c_pad, t, itemsize):
    in_block = bt * c_pad * t * itemsize
    f32_block = bt * c_pad * t * 4
    return int(min(_VMEM_LIMIT_CAP,
                   max(_VMEM_LIMIT_FLOOR, 8 * in_block + 8 * f32_block)))


def cssa_fused_kernel(conv_ref, rgb_ref, ir_ref, out_ref):
    # conv_ref: (1, 1, 4) f32 = [w_rgb, b_rgb, w_ir, b_ir] (the two Conv1d(1,1,k=1) ECAs).
    # rgb/ir/out: (Bt, C, HW) with HW = full spatial extent (GAP computed in-kernel).
    rgb = rgb_ref[...].astype(jnp.float32)
    ir = ir_ref[...].astype(jnp.float32)
    c = rgb.shape[1]
    hw = rgb.shape[2]
    p = conv_ref[...]                                                  # (1, 1, 4)

    inv_hw = 1.0 / hw
    gap_rgb = jnp.sum(rgb, axis=2, keepdims=True) * inv_hw             # (Bt, C, 1)
    gap_ir = jnp.sum(ir, axis=2, keepdims=True) * inv_hw
    logit_rgb = p[:, :, 0:1] * gap_rgb + p[:, :, 1:2]
    logit_ir = p[:, :, 2:3] * gap_ir + p[:, :, 3:4]

    # Channel switching: sign test == sigmoid(logit) > 0.5 (no EUP sigmoid needed).
    s_rgb = jnp.where(logit_rgb > 0.0, rgb, ir)                        # (Bt, C, HW)
    s_ir = jnp.where(logit_ir > 0.0, ir, rgb)
    both = s_rgb + s_ir

    # Spatial attention over the concatenated 2C channel axis (f32 accumulation).
    cap = jnp.sum(both, axis=1, keepdims=True) * (1.0 / (2.0 * c))     # (Bt, 1, HW)
    cmp = jnp.maximum(jnp.max(s_rgb, axis=1, keepdims=True),
                      jnp.max(s_ir, axis=1, keepdims=True))            # (Bt, 1, HW)
    gate = jax.nn.sigmoid(cap) * jax.nn.sigmoid(cmp) * 0.5
    out_ref[...] = (both * gate).astype(out_ref.dtype)


def cssa_tiled_kernel(logit_ref, rgb_ref, ir_ref, out_ref):
    # logit_ref: (Bt, C, 2) f32 packed [rgb_logit, ir_logit]; features/out (Bt, C, T).
    rgb = rgb_ref[...].astype(jnp.float32)
    ir = ir_ref[...].astype(jnp.float32)
    c = rgb.shape[1]

    use_rgb = logit_ref[:, :, 0:1] > 0.0                               # (Bt, C, 1)
    use_ir = logit_ref[:, :, 1:2] > 0.0
    s_rgb = jnp.where(use_rgb, rgb, ir)                                # (Bt, C, T)
    s_ir = jnp.where(use_ir, ir, rgb)
    both = s_rgb + s_ir

    cap = jnp.sum(both, axis=1, keepdims=True) * (1.0 / (2.0 * c))     # (Bt, 1, T)
    cmp = jnp.maximum(jnp.max(s_rgb, axis=1, keepdims=True),
                      jnp.max(s_ir, axis=1, keepdims=True))
    gate = jax.nn.sigmoid(cap) * jax.nn.sigmoid(cmp) * 0.5
    out_ref[...] = (both * gate).astype(out_ref.dtype)


def _cssa_forward(rgb_nchw, ir_nchw, params, mode="auto", out_dtype=None):
    """params = [w_rgb, b_rgb, w_ir, b_ir]: the two Conv1d(1, 1, k=1) ECA layers."""
    B, C, H, W = rgb_nchw.shape
    HW = H * W
    rgb = rgb_nchw.reshape(B, C, HW)
    ir = ir_nchw.reshape(B, C, HW)

    in_dtype = rgb.dtype
    out_dt = jnp.dtype(out_dtype) if out_dtype is not None else in_dtype
    itemsize = jnp.dtype(in_dtype).itemsize
    sub = 16 if itemsize == 2 else 8
    c_pad = _round_up(C, sub)
    hw128 = _round_up(HW, 128)
    params = jnp.asarray(params, jnp.float32).reshape(-1)

    use_fused = (mode == "fused") or (
        mode == "auto" and c_pad * hw128 * 4 <= _FUSED_F32_PER_BATCH)

    if use_fused:
        # Single-pass path: GAP/ECA fused into the kernel; grid only over batch.
        f32_per_batch = c_pad * hw128 * 4
        want_bt = max(1, _FUSED_F32_PER_BATCH // max(1, f32_per_batch))
        if B >= 2:
            want_bt = min(want_bt, B // 2)   # >=2 grid steps -> feed both v7x TCs
        Bt = _largest_divisor_leq(B, want_bt)
        conv = params.reshape(1, 1, 4)

        out = pl.pallas_call(
            cssa_fused_kernel,
            out_shape=jax.ShapeDtypeStruct((B, C, HW), out_dt),
            grid=(B // Bt,),
            in_specs=[
                pl.BlockSpec((1, 1, 4), lambda b: (0, 0, 0)),      # ECA conv params
                pl.BlockSpec((Bt, C, HW), lambda b: (b, 0, 0)),    # RGB features
                pl.BlockSpec((Bt, C, HW), lambda b: (b, 0, 0)),    # IR features
            ],
            out_specs=pl.BlockSpec((Bt, C, HW), lambda b: (b, 0, 0)),
            compiler_params=pltpu.CompilerParams(
                dimension_semantics=("parallel",),
                vmem_limit_bytes=_vmem_limit(Bt, c_pad, hw128, itemsize),
            ),
        )(conv, rgb, ir)
        return out.reshape(B, C, H, W)

    # Tiled path: per-(B, C) switch logits from a cheap wrapper GAP pass; the main
    # kernel streams lane-dense (Bt, C, T) tiles with T % 128 == 0; the last spatial
    # block may be partially out-of-bounds (columns independent, OOB writes masked).
    gap_rgb = jnp.mean(rgb.astype(jnp.float32), axis=2)               # (B, C)
    gap_ir = jnp.mean(ir.astype(jnp.float32), axis=2)
    logits = jnp.stack(
        [params[0] * gap_rgb + params[1], params[2] * gap_ir + params[3]], axis=-1
    )                                                                 # (B, C, 2)

    t_cap = max(128, (_TARGET_BLOCK_BYTES // (c_pad * itemsize)) // 128 * 128)
    T = min(hw128, t_cap)
    want_bt = max(1, _TARGET_BLOCK_BYTES // (c_pad * T * itemsize))
    Bt = _largest_divisor_leq(B, want_bt)
    if (B // Bt) * pl.cdiv(HW, T) < 2:                                # keep both v7x TCs busy
        if HW > 128:
            T = max(128, _round_up(pl.cdiv(HW, 2), 128))
        elif Bt > 1:
            Bt = _largest_divisor_leq(B, Bt // 2)

    out = pl.pallas_call(
        cssa_tiled_kernel,
        out_shape=jax.ShapeDtypeStruct((B, C, HW), out_dt),
        grid=(B // Bt, pl.cdiv(HW, T)),
        in_specs=[
            pl.BlockSpec((Bt, C, 2), lambda bi, ti: (bi, 0, 0)),      # packed switch logits
            pl.BlockSpec((Bt, C, T), lambda bi, ti: (bi, 0, ti)),     # RGB features
            pl.BlockSpec((Bt, C, T), lambda bi, ti: (bi, 0, ti)),     # IR features
        ],
        out_specs=pl.BlockSpec((Bt, C, T), lambda bi, ti: (bi, 0, ti)),
        compiler_params=pltpu.CompilerParams(
            dimension_semantics=("parallel", "parallel"),
            vmem_limit_bytes=_vmem_limit(Bt, c_pad, T, itemsize),
        ),
    )(logits, rgb, ir)
    return out.reshape(B, C, H, W)


cssa_forward = jax.jit(_cssa_forward, static_argnames=("mode", "out_dtype"))


def cssa_reference(rgb, ir, params):
    """Pure-JAX reference mirroring the PyTorch CSSA module exactly."""
    C = rgb.shape[1]
    w_rgb, b_rgb, w_ir, b_ir = params[0], params[1], params[2], params[3]

    def eca(x, w, b):
        gap = jnp.mean(x, axis=(2, 3))                                # (B, C)
        return jax.nn.sigmoid(w * gap + b)

    rgb_w = eca(rgb, w_rgb, b_rgb)[:, :, None, None]
    ir_w = eca(ir, w_ir, b_ir)[:, :, None, None]
    switch_rgb = jnp.where(rgb_w > 0.5, rgb, ir)
    switch_ir = jnp.where(ir_w > 0.5, ir, rgb)
    concat = jnp.concatenate([switch_rgb, switch_ir], axis=1)         # (B, 2C, H, W)
    cap = jax.nn.sigmoid(jnp.mean(concat, axis=1, keepdims=True))
    cmp = jax.nn.sigmoid(jnp.max(concat, axis=1, keepdims=True))
    mul = concat * cap * cmp
    return (mul[:, :C] + mul[:, C:]) * 0.5


if __name__ == "__main__":
    key = jax.random.PRNGKey(0)
    k1, k2, k3, k4, k5 = jax.random.split(key, 5)

    # Conv1d(1, 1, k=1) params for the two ECA blocks: [w_rgb, b_rgb, w_ir, b_ir].
    params = jax.random.normal(k3, (4,), dtype=jnp.float32) * 0.5

    # 1) f32, small shape -> fused single-pass path (GAP/ECA computed in-kernel).
    B, C, H, W = 2, 4, 16, 16
    rgb = jax.random.normal(k1, (B, C, H, W), dtype=jnp.float32)
    ir = jax.random.normal(k2, (B, C, H, W), dtype=jnp.float32)
    ref = cssa_reference(rgb, ir, params)
    out = jax.block_until_ready(cssa_forward(rgb, ir, params))
    assert out.shape == ref.shape
    err = float(jnp.max(jnp.abs(out - ref)))
    assert jnp.allclose(out, ref, atol=1e-5, rtol=1e-5), f"fused max err {err}"

    # 2) Forced tiled path, lane-aligned HW (256 -> two 128-wide spatial tiles).
    out_t = jax.block_until_ready(cssa_forward(rgb, ir, params, mode="tiled"))
    err_t = float(jnp.max(jnp.abs(out_t - ref)))
    assert jnp.allclose(out_t, ref, atol=1e-5, rtol=1e-5), f"tiled max err {err_t}"

    # 3) Forced tiled path, HW = 49 (not a multiple of 128): exercises the partially
    #    out-of-bounds last spatial block (no padding / slicing passes in the wrapper).
    rgb2 = jax.random.normal(k4, (B, C, 7, 7), dtype=jnp.float32)
    ir2 = jax.random.normal(k5, (B, C, 7, 7), dtype=jnp.float32)
    ref2 = cssa_reference(rgb2, ir2, params)
    out2 = jax.block_until_ready(cssa_forward(rgb2, ir2, params, mode="tiled"))
    err2 = float(jnp.max(jnp.abs(out2 - ref2)))
    assert jnp.allclose(out2, ref2, atol=1e-5, rtol=1e-5), f"oob-tile max err {err2}"

    # 4) bf16 inputs (no wrapper cast pass; kernel reads bf16, accumulates in f32).
    rgb_bf = rgb.astype(jnp.bfloat16)
    ir_bf = ir.astype(jnp.bfloat16)
    ref_bf = cssa_reference(rgb_bf.astype(jnp.float32), ir_bf.astype(jnp.float32), params)
    out_bf = jax.block_until_ready(cssa_forward(rgb_bf, ir_bf, params))
    err_bf = float(jnp.max(jnp.abs(out_bf.astype(jnp.float32) - ref_bf)))
    assert err_bf < 0.05, f"bf16 max err {err_bf}"

    print("KERNEL_OK")
</pallas_src>

<mosaic_0001>
module attributes {stable_mosaic.version = 11 : i64} {
  func.func @cssa_fused_kernel(%arg0: i32, %arg1: memref<1x1x4xf32, #tpu.memory_space<vmem>>, %arg2: memref<1x4x256xf32, #tpu.memory_space<vmem>>, %arg3: memref<1x4x256xf32, #tpu.memory_space<vmem>>, %arg4: memref<1x4x256xf32, #tpu.memory_space<vmem>>) attributes {dimension_semantics = [#tpu.dimension_semantics<parallel>], iteration_bounds = array<i64: 2>, scalar_prefetch = 0 : i64, scratch_operands = 0 : i64, tpu.core_type = #tpu.core_type<tc>, window_params = [{pipeline_mode = #tpu.pipeline_mode<synchronous>, transform_indices = @transform_0, window_bounds = array<i64: 1, 1, 4>}, {transform_indices = @transform_1, window_bounds = array<i64: 1, 4, 256>}, {transform_indices = @transform_2, window_bounds = array<i64: 1, 4, 256>}, {transform_indices = @transform_3, window_bounds = array<i64: 1, 4, 256>}]} {
    %c0 = arith.constant 0 : index
    %c0_0 = arith.constant 0 : index
    %c0_1 = arith.constant 0 : index
    %0 = vector.load %arg2[%c0, %c0_0, %c0_1] : memref<1x4x256xf32, #tpu.memory_space<vmem>>, vector<1x4x256xf32>
    %c0_2 = arith.constant 0 : index
    %c0_3 = arith.constant 0 : index
    %c0_4 = arith.constant 0 : index
    %1 = vector.load %arg3[%c0_2, %c0_3, %c0_4] : memref<1x4x256xf32, #tpu.memory_space<vmem>>, vector<1x4x256xf32>
    %c0_5 = arith.constant 0 : index
    %c0_6 = arith.constant 0 : index
    %c0_7 = arith.constant 0 : index
    %2 = vector.load %arg1[%c0_5, %c0_6, %c0_7] : memref<1x1x4xf32, #tpu.memory_space<vmem>>, vector<1x1x4xf32>
    %cst = arith.constant dense<0.000000e+00> : vector<1x4xf32>
    %3 = vector.multi_reduction <add>, %0, %cst [2] : vector<1x4x256xf32> to vector<1x4xf32>
    %4 = vector.shape_cast %3 : vector<1x4xf32> to vector<1x4x1xf32>
    %cst_8 = arith.constant 3.906250e-03 : f32
    %5 = vector.broadcast %cst_8 : f32 to vector<1x4x1xf32>
    %6 = arith.mulf %4, %5 : vector<1x4x1xf32>
    %cst_9 = arith.constant dense<0.000000e+00> : vector<1x4xf32>
    %7 = vector.multi_reduction <add>, %1, %cst_9 [2] : vector<1x4x256xf32> to vector<1x4xf32>
    %8 = vector.shape_cast %7 : vector<1x4xf32> to vector<1x4x1xf32>
    %cst_10 = arith.constant 3.906250e-03 : f32
    %9 = vector.broadcast %cst_10 : f32 to vector<1x4x1xf32>
    %10 = arith.mulf %8, %9 : vector<1x4x1xf32>
    %11 = vector.extract_strided_slice %2 {offsets = [0, 0, 0], sizes = [1, 1, 1], strides = [1, 1, 1]} : vector<1x1x4xf32> to vector<1x1x1xf32>
    %12 = vector.broadcast %11 : vector<1x1x1xf32> to vector<1x4x1xf32>
    %13 = arith.mulf %12, %6 : vector<1x4x1xf32>
    %14 = vector.extract_strided_slice %2 {offsets = [0, 0, 1], sizes = [1, 1, 1], strides = [1, 1, 1]} : vector<1x1x4xf32> to vector<1x1x1xf32>
    %15 = vector.broadcast %14 : vector<1x1x1xf32> to vector<1x4x1xf32>
    %16 = arith.addf %13, %15 : vector<1x4x1xf32>
    %17 = vector.extract_strided_slice %2 {offsets = [0, 0, 2], sizes = [1, 1, 1], strides = [1, 1, 1]} : vector<1x1x4xf32> to vector<1x1x1xf32>
    %18 = vector.broadcast %17 : vector<1x1x1xf32> to vector<1x4x1xf32>
    %19 = arith.mulf %18, %10 : vector<1x4x1xf32>
    %20 = vector.extract_strided_slice %2 {offsets = [0, 0, 3], sizes = [1, 1, 1], strides = [1, 1, 1]} : vector<1x1x4xf32> to vector<1x1x1xf32>
    %21 = vector.broadcast %20 : vector<1x1x1xf32> to vector<1x4x1xf32>
    %22 = arith.addf %19, %21 : vector<1x4x1xf32>
    %cst_11 = arith.constant 0.000000e+00 : f32
    %23 = vector.broadcast %cst_11 : f32 to vector<1x4x1xf32>
    %24 = arith.cmpf ogt, %16, %23 : vector<1x4x1xf32>
    %25 = vector.shape_cast %24 : vector<1x4x1xi1> to vector<1x4x1xi1>
    %26 = vector.broadcast %25 : vector<1x4x1xi1> to vector<1x4x256xi1>
    %27 = arith.select %26, %0, %1 : vector<1x4x256xi1>, vector<1x4x256xf32>
    %cst_12 = arith.constant 0.000000e+00 : f32
    %28 = vector.broadcast %cst_12 : f32 to vector<1x4x1xf32>
    %29 = arith.cmpf ogt, %22, %28 : vector<1x4x1xf32>
    %30 = vector.shape_cast %29 : vector<1x4x1xi1> to vector<1x4x1xi1>
    %31 = vector.broadcast %30 : vector<1x4x1xi1> to vector<1x4x256xi1>
    %32 = arith.select %31, %1, %0 : vector<1x4x256xi1>, vector<1x4x256xf32>
    %33 = arith.addf %27, %32 : vector<1x4x256xf32>
    %cst_13 = arith.constant dense<0.000000e+00> : vector<1x256xf32>
    %34 = vector.multi_reduction <add>, %33, %cst_13 [1] : vector<1x4x256xf32> to vector<1x256xf32>
    %35 = vector.shape_cast %34 : vector<1x256xf32> to vector<1x1x256xf32>
    %cst_14 = arith.constant 1.250000e-01 : f32
    %36 = vector.broadcast %cst_14 : f32 to vector<1x1x256xf32>
    %37 = arith.mulf %35, %36 : vector<1x1x256xf32>
    %cst_15 = arith.constant dense<0xFF800000> : vector<1x256xf32>
    %38 = vector.multi_reduction <maximumf>, %27, %cst_15 [1] : vector<1x4x256xf32> to vector<1x256xf32>
    %39 = vector.shape_cast %38 : vector<1x256xf32> to vector<1x1x256xf32>
    %cst_16 = arith.constant dense<0xFF800000> : vector<1x256xf32>
    %40 = vector.multi_reduction <maximumf>, %32, %cst_16 [1] : vector<1x4x256xf32> to vector<1x256xf32>
    %41 = vector.shape_cast %40 : vector<1x256xf32> to vector<1x1x256xf32>
    %42 = arith.maximumf %39, %41 : vector<1x1x256xf32>
    %43 = arith.negf %37 : vector<1x1x256xf32>
    %44 = math.exp %43 : vector<1x1x256xf32>
    %cst_17 = arith.constant 1.000000e+00 : f32
    %45 = vector.broadcast %cst_17 : f32 to vector<1x1x256xf32>
    %46 = arith.addf %45, %44 : vector<1x1x256xf32>
    %47 = arith.divf %45, %46 : vector<1x1x256xf32>
    %48 = arith.negf %42 : vector<1x1x256xf32>
    %49 = math.exp %48 : vector<1x1x256xf32>
    %cst_18 = arith.constant 1.000000e+00 : f32
    %50 = vector.broadcast %cst_18 : f32 to vector<1x1x256xf32>
    %51 = arith.addf %50, %49 : vector<1x1x256xf32>
    %52 = arith.divf %50, %51 : vector<1x1x256xf32>
    %53 = arith.mulf %47, %52 : vector<1x1x256xf32>
    %cst_19 = arith.constant 5.000000e-01 : f32
    %54 = vector.broadcast %cst_19 : f32 to vector<1x1x256xf32>
    %55 = arith.mulf %53, %54 : vector<1x1x256xf32>
    %56 = vector.broadcast %55 : vector<1x1x256xf32> to vector<1x4x256xf32>
    %57 = arith.mulf %33, %56 : vector<1x4x256xf32>
    %c0_20 = arith.constant 0 : index
    %c0_21 = arith.constant 0 : index
    %c0_22 = arith.constant 0 : index
    %58 = vector.load %arg4[%c0_20, %c0_21, %c0_22] : memref<1x4x256xf32, #tpu.memory_space<vmem>>, vector<1x4x256xf32>
    tpu.vector_store %arg4[%c0_20, %c0_21, %c0_22], %57 {strides = array<i32>} : memref<1x4x256xf32, #tpu.memory_space<vmem>>, vector<1x4x256xf32>,
    return
  }
  func.func @transform_0(%arg0: i32) -> (i32, i32, i32) {
    %c0_i32 = arith.constant 0 : i32
    %c0_i32_0 = arith.constant 0 : i32
    %c0_i32_1 = arith.constant 0 : i32
    %c0_i32_2 = arith.constant 0 : i32
    return %c0_i32, %c0_i32_0, %c0_i32_1 : i32, i32, i32
  }
  func.func @transform_1(%arg0: i32) -> (i32, i32, i32) {
    %c0_i32 = arith.constant 0 : i32
    %c0_i32_0 = arith.constant 0 : i32
    %c0_i32_1 = arith.constant 0 : i32
    return %arg0, %c0_i32, %c0_i32_0 : i32, i32, i32
  }
  func.func @transform_2(%arg0: i32) -> (i32, i32, i32) {
    %c0_i32 = arith.constant 0 : i32
    %c0_i32_0 = arith.constant 0 : i32
    %c0_i32_1 = arith.constant 0 : i32
    return %arg0, %c0_i32, %c0_i32_0 : i32, i32, i32
  }
  func.func @transform_3(%arg0: i32) -> (i32, i32, i32) {
    %c0_i32 = arith.constant 0 : i32
    %c0_i32_0 = arith.constant 0 : i32
    %c0_i32_1 = arith.constant 0 : i32
    return %arg0, %c0_i32, %c0_i32_0 : i32, i32, i32
  }
}

</mosaic_0001>

<llo_original>
// kernel: _cssa_forward.1
$region0: #{_cssa_forward.1}
  #allocation0 [shape = 'u32[]', space=smem, size = 0x4, offset = 0x4, fixed_abs, tag = 'smem constant byte address 0x4 - core index']
  #allocation1 [shape = 'u32[72,128]{1,0:T(1,128)}', space=vmem, size = 0x9000, scoped, tag = 'internal scratch']
  %s0 = inlined_call_operand.vmem [shape: f32[1,1,4], index: 0, kind: input, shape index: {}]
  %s1 = inlined_call_operand.vmem [shape: f32[2,4,256], index: 1, kind: input, shape index: {}]
  %s2 = inlined_call_operand.vmem [shape: f32[2,4,256], index: 2, kind: input, shape index: {}]
  %s3 = inlined_call_operand.vmem [shape: f32[2,4,256], index: 3, kind: output, shape index: {}]
  %s4 = sld [smem:[#allocation0]]
  $region45: #{_cssa_forward.1} parent=0
    _
  %s6 = ssub.s32 1, %s4
  %s7 = scalar_select 0, %s6, %s4
  loop: start=0, step=1, limit=4
  $region2: #{_cssa_forward.1} parent=0 // loop_pre_header
    _
  $region3: #{_cssa_forward.1} parent=0 // loop_header
    %s9 = sphi 0, %s13
    %p10 = scmp.ge.s32.totalorder %s9, 4
    %s17 = sphi 0, %s17
    %s19 = sphi 0, %s17
    %s20 = sphi 0, %s19
    %s34 = sphi 0, %s20
    %s40 = sphi 0, %s42
    %s43 = sphi 0, %s40
    %s44 = sphi 0, %s43
    %s60 = sphi 0, %s44
    %s66 = sphi 0, %s68
    %s69 = sphi 0, %s66
    %s70 = sphi 0, %s69
    %s86 = sphi 0, %s70
    %s92 = sphi 0, %s94
    %s95 = sphi 0, %s92
    %s96 = sphi 0, %s95
    %s112 = sphi 0, %s96
  $region4: #{_cssa_forward.1} parent=0 // loop_header_branch
    %12 = sbr.rel (%p10) target = $region8
  $region5: #{_cssa_forward.1} parent=0 // loop_body
    %s14 = ssub.s32 %s9, 1
    %s15 = ssub.s32 %s9, 2
    %s16 = sadd.s32 %s9, 1
    %s18 = sadd.s32 %s17, 1
    %p21 = scmp.eq.s32.totalorder %s9, 1
    %p22 = scmp.ne.s32.totalorder %s17, %s19
    %p23 = scmp.eq.s32.totalorder %s9, 0
    %p24 = por %p22, %p23
    %p25 = scmp.ne.s32.totalorder %s17, %s19
    %p26 = scmp.eq.s32.totalorder %s14, 1
    %p27 = por %p25, %p26
    %p28 = scmp.ne.s32.totalorder %s19, %s20
    %p29 = scmp.eq.s32.totalorder %s14, 0
    %p30 = por %p28, %p29
    %p31 = scmp.ne.s32.totalorder %s19, %s20
    %p32 = scmp.eq.s32.totalorder %s15, 1
    %p33 = por %p31, %p32
    %p35 = scmp.ne.s32.totalorder %s20, %s34
    %p36 = scmp.eq.s32.totalorder %s15, 0
    %p37 = por %p35, %p36
    %s38 = ssub.s32 %s9, %s16
    %p39 = scmp.eq.s32.totalorder %s38, 0
    %s41 = sadd.s32 %s40, 1
    %s42 = scalar_select %p39, %s40, %s41
    %p45 = pneg %p39
    %p46 = scmp.eq.s32.totalorder %s9, 1
    %p47 = por %p45, %p46
    %p48 = scmp.ne.s32.totalorder %s40, %s43
    %p49 = scmp.eq.s32.totalorder %s9, 0
    %p50 = por %p48, %p49
    %p51 = scmp.ne.s32.totalorder %s40, %s43
    %p52 = scmp.eq.s32.totalorder %s14, 1
    %p53 = por %p51, %p52
    %p54 = scmp.ne.s32.totalorder %s43, %s44
    %p55 = scmp.eq.s32.totalorder %s14, 0
    %p56 = por %p54, %p55
    %p57 = scmp.ne.s32.totalorder %s43, %s44
    %p58 = scmp.eq.s32.totalorder %s15, 1
    %p59 = por %p57, %p58
    %p61 = scmp.ne.s32.totalorder %s44, %s60
    %p62 = scmp.eq.s32.totalorder %s15, 0
    %p63 = por %p61, %p62
    %s64 = ssub.s32 %s9, %s16
    %p65 = scmp.eq.s32.totalorder %s64, 0
    %s67 = sadd.s32 %s66, 1
    %s68 = scalar_select %p65, %s66, %s67
    %p71 = pneg %p65
    %p72 = scmp.eq.s32.totalorder %s9, 1
    %p73 = por %p71, %p72
    %p74 = scmp.ne.s32.totalorder %s66, %s69
    %p75 = scmp.eq.s32.totalorder %s9, 0
    %p76 = por %p74, %p75
    %p77 = scmp.ne.s32.totalorder %s66, %s69
    %p78 = scmp.eq.s32.totalorder %s14, 1
    %p79 = por %p77, %p78
    %p80 = scmp.ne.s32.totalorder %s69, %s70
    %p81 = scmp.eq.s32.totalorder %s14, 0
    %p82 = por %p80, %p81
    %p83 = scmp.ne.s32.totalorder %s69, %s70
    %p84 = scmp.eq.s32.totalorder %s15, 1
    %p85 = por %p83, %p84
    %p87 = scmp.ne.s32.totalorder %s70, %s86
    %p88 = scmp.eq.s32.totalorder %s15, 0
    %p89 = por %p87, %p88
    %s90 = ssub.s32 %s9, %s16
    %p91 = scmp.eq.s32.totalorder %s90, 0
    %s93 = sadd.s32 %s92, 1
    %s94 = scalar_select %p91, %s92, %s93
    %p97 = pneg %p91
    %p98 = scmp.eq.s32.totalorder %s9, 1
    %p99 = por %p97, %p98
    %p100 = scmp.ne.s32.totalorder %s92, %s95
    %p101 = scmp.eq.s32.totalorder %s9, 0
    %p102 = por %p100, %p101
    %p103 = scmp.ne.s32.totalorder %s92, %s95
    %p104 = scmp.eq.s32.totalorder %s14, 1
    %p105 = por %p103, %p104
    %p106 = scmp.ne.s32.totalorder %s95, %s96
    %p107 = scmp.eq.s32.totalorder %s14, 0
    %p108 = por %p106, %p107
    %p109 = scmp.ne.s32.totalorder %s95, %s96
    %p110 = scmp.eq.s32.totalorder %s15, 1
    %p111 = por %p109, %p110
    %p113 = scmp.ne.s32.totalorder %s96, %s112
    %p114 = scmp.eq.s32.totalorder %s15, 0
    %p115 = por %p113, %p114
    %p116 = scmp.le.s32.totalorder 1, %s9
    %p117 = scmp.lt.s32.totalorder %s9, 3
    %p118 = pnand %p116, %p117
    %p119 = pneg %p118
    // Predicated region
    $region9: #{_cssa_forward.1} parent=5 // pred_check
      _
    $region10: #{_cssa_forward.1} parent=5 // pred_check_branch
      %121 = sbr.rel (%p118) target = $region12
    $region11: #{_cssa_forward.1} parent=5 // pred_region
      %s122 = ssub.s32 %s9, 1
      // Predicated region
      $region13: #{_cssa_forward.1} parent=11 // pred_check
        %p123 = pneg %p30
      $region14: #{_cssa_forward.1} parent=11 // pred_check_branch
        %125 = sbr.rel (%p123) target = $region16
      $region15: #{_cssa_forward.1} parent=11 // pred_region
        _
      $region16: #{_cssa_forward.1} parent=11 // pred_fallthru
        _
    $region12: #{_cssa_forward.1} parent=5 // pred_fallthru
      _
    %p126 = scmp.lt.s32.totalorder %s9, 2
    // Predicated region
    $region17: #{_cssa_forward.1} parent=5 // pred_check
      %p127 = pneg %p126
    $region18: #{_cssa_forward.1} parent=5 // pred_check_branch
      %129 = sbr.rel (%p127) target = $region20
    $region19: #{_cssa_forward.1} parent=5 // pred_region
      // Predicated region
      $region21: #{_cssa_forward.1} parent=19 // pred_check
        %p130 = pneg %p50
      $region22: #{_cssa_forward.1} parent=19 // pred_check_branch
        %132 = sbr.rel (%p130) target = $region24
      $region23: #{_cssa_forward.1} parent=19 // pred_region
        %p133 = scmp.lt.s32.totalorder %s9, 1
        %s134 = scalar_select %p133, %s9, 1
        %s135 = smul.addr %s134, 2
        %s136 = smul.addr %s135, 4
        %s137 = scalar_lea.vmem %s1, %s136
      $region24: #{_cssa_forward.1} parent=19 // pred_fallthru
        _
      // Predicated region
      $region25: #{_cssa_forward.1} parent=19 // pred_check
        %p138 = pneg %p76
      $region26: #{_cssa_forward.1} parent=19 // pred_check_branch
        %140 = sbr.rel (%p138) target = $region28
      $region27: #{_cssa_forward.1} parent=19 // pred_region
        %p141 = scmp.lt.s32.totalorder %s9, 1
        %s142 = scalar_select %p141, %s9, 1
        %s143 = smul.addr %s142, 2
        %s144 = smul.addr %s143, 4
        %s145 = scalar_lea.vmem %s2, %s144
      $region28: #{_cssa_forward.1} parent=19 // pred_fallthru
        _
    $region20: #{_cssa_forward.1} parent=5 // pred_fallthru
      _
    %p146 = scmp.le.s32.totalorder 1, %s9
    %p147 = scmp.lt.s32.totalorder %s9, 3
    %p148 = pnand %p146, %p147
    %p149 = pneg %p148
    // Predicated region
    $region29: #{_cssa_forward.1} parent=5 // pred_check
      _
    $region30: #{_cssa_forward.1} parent=5 // pred_check_branch
      %151 = sbr.rel (%p148) target = $region32
    $region31: #{_cssa_forward.1} parent=5 // pred_region
      %s152 = ssub.s32 %s9, 1
      %p153 = pneg %p30
      %p154 = pneg %p27
      %p155 = scmp.lt.s32.totalorder %s14, 1
      %s156 = scalar_select %p155, %s14, 1
      %s157 = smul.addr %s156, 2
      %s158 = smul.addr %s157, 4
      %s159 = scalar_lea.vmem %s1, %s158
      %p160 = pneg %p56
      %p161 = pneg %p53
      %p162 = scmp.lt.s32.totalorder %s14, 1
      %s163 = scalar_select %p162, %s14, 1
      %s164 = smul.addr %s163, 2
      %s165 = smul.addr %s164, 4
      %s166 = scalar_lea.vmem %s2, %s165
      %p167 = pneg %p82
      %p168 = pneg %p79
      %p169 = pneg %p108
      %p170 = pneg %p105
      %p171 = scmp.lt.s32.totalorder %s14, 1
      %s172 = scalar_select %p171, %s14, 1
      %s173 = smul.addr %s172, 2
      %s174 = smul.addr %s173, 4
      %s175 = scalar_lea.vmem %s3, %s174
      %p176 = scmp.lt.s32.totalorder %s14, 1
      %s177 = scalar_select %p176, %s14, 1
      %s178 = smul.addr %s177, 2
      %s179 = smul.addr %s178, 4
      %s180 = scalar_lea.vmem %s1, %s179
      %p181 = scmp.lt.s32.totalorder %s14, 1
      %s182 = scalar_select %p181, %s14, 1
      %s183 = smul.addr %s182, 2
      %s184 = smul.addr %s183, 4
      %s185 = scalar_lea.vmem %s2, %s184
      %p186 = scmp.lt.s32.totalorder %s14, 1
      %s187 = scalar_select %p186, %s14, 1
      %s188 = smul.addr %s187, 2
      %s189 = smul.addr %s188, 4
      %s190 = scalar_lea.vmem %s3, %s189
      %v191 = vld [vmem:[%s180] sm:$0xff]
      %v192 = vld [vmem:[%s185] sm:$0xff]
      %v193 = vld [vmem:[%s0] sm:$0x1]
      %195 = vst [vmem:[#allocation1] ss:$2 sm:$0xff] %v191
      %v196 = vld.sshfl [vmem:[#allocation1] sm:$0xff pattern:$0x75316420]
      %v197 = vld.sshfl [vmem:[#allocation1 + $0x8] sm:$0xff pattern:$0x75316420]
      %vm200 = vcmask 1043456
      %v201 = vsel %vm200, %v196, 0.0
      %v202 = vsel %vm200, %v197, 0.0
      %v203 = vadd.f32 %v201, %v202
      %204 = vadd.xlane.f32.xlu0 %v203
      %v205 = vpop.xlane.xlu0 %204
      %v206 = vmul.f32 %v205, 0.00390625
      %208 = vst [vmem:[#allocation1] ss:$2 sm:$0xff] %v192
      %v209 = vld.sshfl [vmem:[#allocation1] sm:$0xff pattern:$0x75316420]
      %v210 = vld.sshfl [vmem:[#allocation1 + $0x8] sm:$0xff pattern:$0x75316420]
      %v213 = vsel %vm200, %v209, 0.0
      %v214 = vsel %vm200, %v210, 0.0
      %v215 = vadd.f32 %v213, %v214
      %216 = vadd.xlane.f32.xlu0 %v215
      %v217 = vpop.xlane.xlu0 %216
      %v218 = vmul.f32 %v217, 0.00390625
      %v220 = vperm.slane %v193, 0
      %v222 = vmul.f32 %v220, %v206
      %223 = vrot.lane.b32.xlu0 %v220, 127
      %v224 = vpop.permute.xlu0 %223
      %v226 = vadd.f32 %v222, %v224
      %v227 = vmul.f32 %v220, %v218
      %v228 = vadd.f32 %v227, %v224
      %vm229 = vcmp.gt.f32.partialorder %v226, 0.0
      %v230 = vsel %vm229, 1, 0
      %231 = vset.pattern.permute.xlu0 0
      %232 = vperm.xlu0 %231, %v230
      %v233 = vpop.permute.xlu0 %232
      %vm234 = vcmp.eq.s32.totalorder %v233, 1
      %235 = vst [vmem:[#allocation1] ss:$2 sm:$0xff] %v191
      %v236 = vld.sshfl [vmem:[#allocation1] sm:$0xff pattern:$0x75316420]
      %v237 = vld.sshfl [vmem:[#allocation1 + $0x8] sm:$0xff pattern:$0x75316420]
      %240 = vst [vmem:[#allocation1] ss:$2 sm:$0xff] %v192
      %v241 = vld.sshfl [vmem:[#allocation1] sm:$0xff pattern:$0x75316420]
      %v242 = vld.sshfl [vmem:[#allocation1 + $0x8] sm:$0xff pattern:$0x75316420]
      %v245 = vsel %vm234, %v236, %v241
      %v246 = vsel %vm234, %v237, %v242
      %vm247 = vcmp.gt.f32.partialorder %v228, 0.0
      %v248 = vsel %vm247, 1, 0
      %249 = vset.pattern.permute.xlu0 2
      %250 = vperm.xlu0 %249, %v248
      %v251 = vpop.permute.xlu0 %250
      %vm252 = vcmp.eq.s32.totalorder %v251, 1
      %253 = vst [vmem:[#allocation1] ss:$2 sm:$0xff] %v192
      %v254 = vld.sshfl [vmem:[#allocation1] sm:$0xff pattern:$0x75316420]
      %v255 = vld.sshfl [vmem:[#allocation1 + $0x8] sm:$0xff pattern:$0x75316420]
      %258 = vst [vmem:[#allocation1] ss:$2 sm:$0xff] %v191
      %v259 = vld.sshfl [vmem:[#allocation1] sm:$0xff pattern:$0x75316420]
      %v260 = vld.sshfl [vmem:[#allocation1 + $0x8] sm:$0xff pattern:$0x75316420]
      %v263 = vsel %vm252, %v254, %v259
      %v264 = vsel %vm252, %v255, %v260
      %v265 = vadd.f32 %v245, %v263
      %v266 = vadd.f32 %v246, %v264
      %v267 = vsel %vm200, %v265, 0.0
      %v268 = vrot.slane %v267, 4
      %v269 = vadd.f32 %v267, %v268
      %v270 = vrot.slane %v269, 2
      %v271 = vadd.f32 %v269, %v270
      %v272 = vrot.slane %v271, 1
      %v273 = vadd.f32 %v271, %v272
      %v274 = vsel %vm200, %v266, 0.0
      %v275 = vrot.slane %v274, 4
      %v276 = vadd.f32 %v274, %v275
      %v277 = vrot.slane %v276, 2
      %v278 = vadd.f32 %v276, %v277
      %v279 = vrot.slane %v278, 1
      %v280 = vadd.f32 %v278, %v279
      %v281 = vmul.f32 %v273, 0.125
      %v282 = vmul.f32 %v280, 0.125
      %v283 = vsel %vm200, %v245, -inf
      %v284 = vrot.slane %v283, 4
      %v285 = vmax.f32 %v283, %v284
      %v286 = vrot.slane %v285, 2
      %v287 = vmax.f32 %v285, %v286
      %v288 = vrot.slane %v287, 1
      %v289 = vmax.f32 %v287, %v288
      %v290 = vsel %vm200, %v246, -inf
      %v291 = vrot.slane %v290, 4
      %v292 = vmax.f32 %v290, %v291
      %v293 = vrot.slane %v292, 2
      %v294 = vmax.f32 %v292, %v293
      %v295 = vrot.slane %v294, 1
      %v296 = vmax.f32 %v294, %v295
      %v297 = vsel %vm200, %v263, -inf
      %v298 = vrot.slane %v297, 4
      %v299 = vmax.f32 %v297, %v298
      %v300 = vrot.slane %v299, 2
      %v301 = vmax.f32 %v299, %v300
      %v302 = vrot.slane %v301, 1
      %v303 = vmax.f32 %v301, %v302
      %v304 = vsel %vm200, %v264, -inf
      %v305 = vrot.slane %v304, 4
      %v306 = vmax.f32 %v304, %v305
      %v307 = vrot.slane %v306, 2
      %v308 = vmax.f32 %v306, %v307
      %v309 = vrot.slane %v308, 1
      %v310 = vmax.f32 %v308, %v309
      %v311 = vmax.f32 %v289, %v303
      %v312 = vmax.f32 %v296, %v310
      %v313 = vxor.u32 %v281, 2147483648
      %v314 = vxor.u32 %v282, 2147483648
      %v315 = vmul.f32 %v313, 1.442695
      %v316 = vpow.pop %v315
      %v317 = vmul.f32 %v314, 1.442695
      %v318 = vpow.pop %v317
      %v319 = vadd.f32 %v316, 1.0
      %v320 = vadd.f32 %v318, 1.0
      %v321 = vrcp.pop %v319
      %v322 = vmul.f32 %v319, %v321
      %v323 = vsub.f32 1.0, %v322
      %v324 = vmul.f32 %v321, %v323
      %v325 = vadd.f32 %v321, %v324
      %vm326 = vweird.f32 %v319
      %vm327 = vweird.f32 %v321
      %vm328 = vmor %vm326, %vm327
      %v329 = vsel %vm328, %v321, %v325
      %v330 = vand.u32 2147483647, %v319
      %vm331 = vcmp.eq.f32.partialorder %v330, 8.507059e+37
      %v332 = vand.u32 %v319, 2147483648
      %v333 = vor.u32 1.1754944e-38, %v332
      %v334 = vsel %vm331, %v333, %v329
      %v335 = vmul.f32 1.0, %v334
      %v336 = vrcp.pop %v320
      %v337 = vmul.f32 %v320, %v336
      %v338 = vsub.f32 1.0, %v337
      %v339 = vmul.f32 %v336, %v338
      %v340 = vadd.f32 %v336, %v339
      %vm341 = vweird.f32 %v320
      %vm342 = vweird.f32 %v336
      %vm343 = vmor %vm341, %vm342
      %v344 = vsel %vm343, %v336, %v340
      %v345 = vand.u32 2147483647, %v320
      %vm346 = vcmp.eq.f32.partialorder %v345, 8.507059e+37
      %v347 = vand.u32 %v320, 2147483648
      %v348 = vor.u32 1.1754944e-38, %v347
      %v349 = vsel %vm346, %v348, %v344
      %v350 = vmul.f32 1.0, %v349
      %v351 = vxor.u32 %v311, 2147483648
      %v352 = vxor.u32 %v312, 2147483648
      %v353 = vmul.f32 %v351, 1.442695
      %v354 = vpow.pop %v353
      %v355 = vmul.f32 %v352, 1.442695
      %v356 = vpow.pop %v355
      %v357 = vadd.f32 %v354, 1.0
      %v358 = vadd.f32 %v356, 1.0
      %v359 = vrcp.pop %v357
      %v360 = vmul.f32 %v357, %v359
      %v361 = vsub.f32 1.0, %v360
      %v362 = vmul.f32 %v359, %v361
      %v363 = vadd.f32 %v359, %v362
      %vm364 = vweird.f32 %v357
      %vm365 = vweird.f32 %v359
      %vm366 = vmor %vm364, %vm365
      %v367 = vsel %vm366, %v359, %v363
      %v368 = vand.u32 2147483647, %v357
      %vm369 = vcmp.eq.f32.partialorder %v368, 8.507059e+37
      %v370 = vand.u32 %v357, 2147483648
      %v371 = vor.u32 1.1754944e-38, %v370
      %v372 = vsel %vm369, %v371, %v367
      %v373 = vmul.f32 1.0, %v372
      %v374 = vrcp.pop %v358
      %v375 = vmul.f32 %v358, %v374
      %v376 = vsub.f32 1.0, %v375
      %v377 = vmul.f32 %v374, %v376
      %v378 = vadd.f32 %v374, %v377
      %vm379 = vweird.f32 %v358
      %vm380 = vweird.f32 %v374
      %vm381 = vmor %vm379, %vm380
      %v382 = vsel %vm381, %v374, %v378
      %v383 = vand.u32 2147483647, %v358
      %vm384 = vcmp.eq.f32.partialorder %v383, 8.507059e+37
      %v385 = vand.u32 %v358, 2147483648
      %v386 = vor.u32 1.1754944e-38, %v385
      %v387 = vsel %vm384, %v386, %v382
      %v388 = vmul.f32 1.0, %v387
      %v389 = vmul.f32 %v335, %v373
      %v390 = vmul.f32 %v350, %v388
      %v391 = vmul.f32 %v389, 0.5
      %v392 = vmul.f32 %v390, 0.5
      %v393 = vmul.f32 %v265, %v391
      %v394 = vmul.f32 %v266, %v392
      %v397 = vrot.slane %v394, 4
      %v398 = vsel %vm200, %v393, %v397
      %400 = vst [vmem:[%s190] sm:$0xff] %v398
      %p401 = scmp.lt.s32.totalorder %s14, 1
      %s402 = scalar_select %p401, %s14, 1
      %s403 = smul.addr %s402, 2
      %s404 = smul.addr %s403, 4
      %s405 = scalar_lea.vmem %s3, %s404
      // Predicated region
      $region33: #{_cssa_forward.1} parent=31 // pred_check
        %p406 = pneg %p105
      $region34: #{_cssa_forward.1} parent=31 // pred_check_branch
        %408 = sbr.rel (%p406) target = $region36
      $region35: #{_cssa_forward.1} parent=31 // pred_region
        _
      $region36: #{_cssa_forward.1} parent=31 // pred_fallthru
        _
    $region32: #{_cssa_forward.1} parent=5 // pred_fallthru
      _
    %p409 = scmp.le.s32.totalorder 2, %s9
    // Predicated region
    $region37: #{_cssa_forward.1} parent=5 // pred_check
      %p410 = pneg %p409
    $region38: #{_cssa_forward.1} parent=5 // pred_check_branch
      %412 = sbr.rel (%p410) target = $region40
    $region39: #{_cssa_forward.1} parent=5 // pred_region
      %s413 = ssub.s32 %s9, 2
      // Predicated region
      $region41: #{_cssa_forward.1} parent=39 // pred_check
        %p414 = pneg %p111
      $region42: #{_cssa_forward.1} parent=39 // pred_check_branch
        %416 = sbr.rel (%p414) target = $region44
      $region43: #{_cssa_forward.1} parent=39 // pred_region
        %p417 = scmp.lt.s32.totalorder %s15, 1
        %s418 = scalar_select %p417, %s15, 1
        %s419 = smul.addr %s418, 2
        %s420 = smul.addr %s419, 4
        %s421 = scalar_lea.vmem %s3, %s420
      $region44: #{_cssa_forward.1} parent=39 // pred_fallthru
        _
    $region40: #{_cssa_forward.1} parent=5 // pred_fallthru
      _
  $region6: #{_cssa_forward.1} parent=0 // loop_footer
    %s13 = sadd.s32 1, %s9
  $region7: #{_cssa_forward.1} parent=0 // loop_footer_branch
    %8 = sbr.rel target = $region3
  $region8: #{_cssa_forward.1} parent=0 // loop_exit
    _

</llo_original>
